<compile_context>
chip_gen: v7x
topology: tpu7x:2x2x1
jax: 0.10.0
libtpu: 0.0.40
codegen_flags: <defaults>
</compile_context>

<pallas_src>
import functools

import jax
import jax.numpy as jnp
from jax.experimental import pallas as pl
from jax.experimental.pallas import tpu as pltpu


def _round_up(v, m):
    return (v + m - 1) // m * m


def _choose_tiles(B, S, D, P, itemsize):
    """Pick (batch_tile, seq_tile).

    Targets ~8 MiB of double-buffered x+pos tiles per grid step: big enough
    (>~512 KiB/step) to run near the HBM roofline, small enough to leave lots of
    headroom under v7x's 64 MiB physical VMEM (and the default scoped limits on
    v5e/v6e).
    """
    bt = B if B <= 8 else 8
    d_pad = _round_up(D, 128)
    p_pad = _round_up(P, 128)
    budget = 8 * 1024 * 1024
    per_token = 2 * bt * (d_pad + p_pad) * itemsize  # x + pos, double-buffered
    ts_cap = max(128, (budget // per_token) // 128 * 128)
    ts = S if S <= ts_cap else int(ts_cap)
    return bt, ts


def _pool_pos_kernel(x_ref, pos_ref, mask_ref, w_ref, b_ref, out_ref,
                     acc_ref, wsum_ref, *, bt):
    # x_ref:    (BT, TS, D)   pos_ref: (BT, TS, P)   mask_ref: (BT, TS) lane-dense
    # w_ref:    (1, D) VMEM   b_ref:   (1,) SMEM scalar
    # out_ref:  (BT, P)       acc_ref: (BT, P) f32   wsum_ref: (BT, 1) f32
    k = pl.program_id(1)

    @pl.when(k == 0)
    def _init():
        acc_ref[...] = jnp.zeros_like(acc_ref)
        wsum_ref[...] = jnp.zeros_like(wsum_ref)

    p_dim = pos_ref.shape[-1]
    w_row = w_ref[...]                                   # (1, D)
    bias = b_ref[0]                                      # scalar (SMEM)
    mask = mask_ref[...].astype(jnp.float32)             # (BT, TS)
    row_ids = jax.lax.broadcasted_iota(jnp.int32, (bt, 1), 0)

    num_upd = jnp.zeros((bt, p_dim), jnp.float32)
    wsum_upd = jnp.zeros((bt, 1), jnp.float32)
    for b in range(bt):                                  # static unroll, bt <= 8
        x_b = x_ref[b]                                   # (TS, D)
        pos_b = pos_ref[b]                               # (TS, P)
        # Sigmoid gate on the MXU: (1, D) x (TS, D)^T -> (1, TS); tokens stay
        # lane-dense so the mask multiply needs no relayout.
        logits = jax.lax.dot_general(
            w_row, x_b, (((1,), (1,)), ((), ())),
            preferred_element_type=jnp.float32)          # (1, TS)
        w_b = jax.nn.sigmoid(logits + bias) * mask[b:b + 1, :]      # (1, TS)
        # S-contraction on the MXU: (1, TS) @ (TS, P) -> (1, P).
        num_b = jnp.dot(w_b.astype(pos_b.dtype), pos_b,
                        preferred_element_type=jnp.float32)         # (1, P)
        wsum_b = jnp.sum(w_b, axis=-1, keepdims=True)               # (1, 1)
        # Scatter this batch's partial sums into row b via a one-hot column.
        sel = (row_ids == b).astype(jnp.float32)                    # (BT, 1)
        num_upd = num_upd + sel * num_b
        wsum_upd = wsum_upd + sel * wsum_b

    acc_ref[...] += num_upd
    wsum_ref[...] += wsum_upd

    @pl.when(k == pl.num_programs(1) - 1)
    def _finalize():
        denom = jnp.maximum(wsum_ref[...], 1e-6)                    # (BT, 1)
        out_ref[...] = (acc_ref[...] / denom).astype(out_ref.dtype)


def pool_pos(x, pos, weight, bias, mask=None, *, block_b=None, block_s=None):
    """x: (B,S,D), pos: (B,S,P), weight: (1,D) [torch Linear weight], bias: (1,)."""
    B, S, D = x.shape
    P = pos.shape[-1]
    if mask is None:
        mask = jnp.ones((B, S), dtype=bool)
    mask_f = jnp.reshape(mask, (B, S)).astype(jnp.float32)          # lane-dense

    itemsize = x.dtype.itemsize
    bt, ts = _choose_tiles(B, S, D, P, itemsize)
    if block_b is not None:
        bt = int(block_b)
    if block_s is not None:
        ts = int(block_s)

    b_pad = _round_up(B, bt)
    s_pad = _round_up(S, ts)
    # (8,128) block constraints: batch tile on the mask/output sublane axis,
    # sequence tile on the mask lane axis.
    assert bt == b_pad or bt % 8 == 0, "batch tile must equal padded B or be a multiple of 8"
    assert ts == s_pad or ts % 128 == 0, "seq tile must equal padded S or be a multiple of 128"

    if b_pad != B or s_pad != S:
        db, ds = b_pad - B, s_pad - S
        x = jnp.pad(x, ((0, db), (0, ds), (0, 0)))
        pos = jnp.pad(pos, ((0, db), (0, ds), (0, 0)))
        mask_f = jnp.pad(mask_f, ((0, db), (0, ds)))   # zero mask => padding ignored

    w_row = weight.reshape(1, D).astype(x.dtype)
    b_arr = bias.reshape(1).astype(jnp.float32)

    # Explicit scoped-VMEM limit (double-buffered x/pos/mask tiles + headroom),
    # capped at v7x's 64 MiB physical VMEM.
    d_pad, p_pad = _round_up(D, 128), _round_up(P, 128)
    tile_bytes = bt * _round_up(ts, 8) * (d_pad + p_pad) * itemsize
    tile_bytes += _round_up(bt, 8) * _round_up(ts, 128) * 4
    vmem_limit = int(min(64 * 1024 * 1024, max(32 * 1024 * 1024, 3 * tile_bytes)))

    grid = (b_pad // bt, s_pad // ts)
    kernel = functools.partial(_pool_pos_kernel, bt=bt)

    out = pl.pallas_call(
        kernel,
        out_shape=jax.ShapeDtypeStruct((b_pad, P), x.dtype),
        grid_spec=pltpu.PrefetchScalarGridSpec(
            num_scalar_prefetch=0,
            grid=grid,
            in_specs=[
                pl.BlockSpec((bt, ts, D), lambda i, k: (i, k, 0)),   # x
                pl.BlockSpec((bt, ts, P), lambda i, k: (i, k, 0)),   # pos
                pl.BlockSpec((bt, ts), lambda i, k: (i, k)),         # mask (lane-dense)
                pl.BlockSpec((1, D), lambda i, k: (0, 0)),           # Linear weight
                pl.BlockSpec(memory_space=pltpu.MemorySpace.SMEM),   # bias scalar
            ],
            out_specs=pl.BlockSpec((bt, P), lambda i, k: (i, 0)),    # 2-D lane-dense out
            scratch_shapes=[
                pltpu.VMEM((bt, P), jnp.float32),   # numerator accumulator
                pltpu.VMEM((bt, 1), jnp.float32),   # weight-sum accumulator
            ],
        ),
        compiler_params=pltpu.CompilerParams(
            dimension_semantics=("parallel", "arbitrary"),
            vmem_limit_bytes=vmem_limit,
        ),
    )(x, pos, mask_f, w_row, b_arr)
    return out[:B]


def pool_pos_ref(x, pos, weight, bias, mask=None):
    """Pure-JAX reference mirroring the PyTorch module (exact f32, no MXU)."""
    B, S, D = x.shape
    if mask is None:
        mask = jnp.ones((B, S), dtype=bool)
    logits = jnp.sum(x * weight.reshape(1, 1, D), axis=-1) + bias[0]       # (B, S)
    w = jax.nn.sigmoid(logits) * jnp.reshape(mask, (B, S)).astype(x.dtype)  # (B, S)
    w_sum = jnp.maximum(jnp.sum(w, axis=-1, keepdims=True), 1e-6)           # (B, 1)
    return jnp.sum(pos * w[..., None], axis=1) / w_sum                      # (B, P)


if __name__ == "__main__":
    key = jax.random.PRNGKey(0)
    B, S, D, P = 2, 8, 32, 16  # batch, seq, dim_pool, pos dim

    kx, kp, kw, kb, km = jax.random.split(key, 5)
    x = jax.random.normal(kx, (B, S, D), dtype=jnp.float32)
    pos = jax.random.normal(kp, (B, S, P), dtype=jnp.float32)

    # Deterministic Linear(dim_pool, 1) params (torch: weight (1, D), bias (1,)).
    bound = 1.0 / (D ** 0.5)
    weight = jax.random.uniform(kw, (1, D), jnp.float32, -bound, bound)
    bias = jax.random.uniform(kb, (1,), jnp.float32, -bound, bound)

    # A non-trivial mask to exercise the masking path.
    mask = jax.random.uniform(km, (B, S)) > 0.25

    # MXU f32 dots may run as reduced-precision passes on some generations, so the
    # tolerance is loose relative to f32 but far below any logic-error magnitude.
    TOL = dict(atol=1e-2, rtol=1e-2)

    out = jax.block_until_ready(pool_pos(x, pos, weight, bias, mask))
    ref = pool_pos_ref(x, pos, weight, bias, mask)
    assert out.shape == (B, P)
    assert jnp.allclose(out, ref, **TOL)

    # Default (mask=None) path.
    out_nomask = jax.block_until_ready(pool_pos(x, pos, weight, bias))
    assert jnp.allclose(out_nomask, pool_pos_ref(x, pos, weight, bias), **TOL)

    # Exercise the S-tiled accumulation path (grid k > 1) at a still-small shape.
    B2, S2 = 3, 256
    kx2, kp2, km2 = jax.random.split(jax.random.PRNGKey(1), 3)
    x2 = jax.random.normal(kx2, (B2, S2, D), dtype=jnp.float32)
    pos2 = jax.random.normal(kp2, (B2, S2, P), dtype=jnp.float32)
    mask2 = jax.random.uniform(km2, (B2, S2)) > 0.25
    out2 = jax.block_until_ready(pool_pos(x2, pos2, weight, bias, mask2, block_s=128))
    assert jnp.allclose(out2, pool_pos_ref(x2, pos2, weight, bias, mask2), **TOL)

    print("KERNEL_OK")
</pallas_src>

<mosaic_0001>
module attributes {stable_mosaic.version = 11 : i64} {
  func.func @_pool_pos_kernel(%arg0: i32, %arg1: i32, %arg2: memref<2x8x32xf32, #tpu.memory_space<vmem>>, %arg3: memref<2x8x16xf32, #tpu.memory_space<vmem>>, %arg4: memref<2x8xf32, #tpu.memory_space<vmem>>, %arg5: memref<1x32xf32, #tpu.memory_space<vmem>>, %arg6: memref<1xf32, #tpu.memory_space<smem>>, %arg7: memref<2x16xf32, #tpu.memory_space<vmem>>, %arg8: memref<2x16xf32, #tpu.memory_space<vmem>>, %arg9: memref<2x1xf32, #tpu.memory_space<vmem>>) attributes {dimension_semantics = [#tpu.dimension_semantics<parallel>, #tpu.dimension_semantics<arbitrary>], iteration_bounds = array<i64: 1, 1>, scalar_prefetch = 0 : i64, scratch_operands = 2 : i64, tpu.core_type = #tpu.core_type<tc>, window_params = [{transform_indices = @transform_0, window_bounds = array<i64: 2, 8, 32>}, {transform_indices = @transform_1, window_bounds = array<i64: 2, 8, 16>}, {transform_indices = @transform_2, window_bounds = array<i64: 2, 8>}, {pipeline_mode = #tpu.pipeline_mode<synchronous>, transform_indices = @transform_3, window_bounds = array<i64: 1, 32>}, {transform_indices = @transform_4, window_bounds = array<i64: 1>}, {transform_indices = @transform_5, window_bounds = array<i64: 2, 16>}]} {
    %c0_i32 = arith.constant 0 : i32
    %0 = arith.cmpi eq, %arg1, %c0_i32 : i32
    %1 = arith.extui %0 : i1 to i32
    %c0_i32_0 = arith.constant 0 : i32
    %2 = arith.cmpi ne, %1, %c0_i32_0 : i32
    scf.if %2 {
      %cst_36 = arith.constant 0.000000e+00 : f32
      %74 = vector.broadcast %cst_36 : f32 to vector<2x16xf32>
      %c0_37 = arith.constant 0 : index
      %c0_38 = arith.constant 0 : index
      %75 = vector.load %arg8[%c0_37, %c0_38] : memref<2x16xf32, #tpu.memory_space<vmem>>, vector<2x16xf32>
      tpu.vector_store %arg8[%c0_37, %c0_38], %74 {strides = array<i32>} : memref<2x16xf32, #tpu.memory_space<vmem>>, vector<2x16xf32>,
      %cst_39 = arith.constant 0.000000e+00 : f32
      %76 = vector.broadcast %cst_39 : f32 to vector<2x1xf32>
      %c0_40 = arith.constant 0 : index
      %c0_41 = arith.constant 0 : index
      %77 = vector.load %arg9[%c0_40, %c0_41] : memref<2x1xf32, #tpu.memory_space<vmem>>, vector<2x1xf32>
      tpu.vector_store %arg9[%c0_40, %c0_41], %76 {strides = array<i32>} : memref<2x1xf32, #tpu.memory_space<vmem>>, vector<2x1xf32>,
    } else {
    }
    %c0 = arith.constant 0 : index
    %c0_1 = arith.constant 0 : index
    %3 = vector.load %arg5[%c0, %c0_1] : memref<1x32xf32, #tpu.memory_space<vmem>>, vector<1x32xf32>
    %c0_2 = arith.constant 0 : index
    %4 = memref.load %arg6[%c0_2] : memref<1xf32, #tpu.memory_space<smem>>
    %c0_3 = arith.constant 0 : index
    %c0_4 = arith.constant 0 : index
    %5 = vector.load %arg4[%c0_3, %c0_4] : memref<2x8xf32, #tpu.memory_space<vmem>>, vector<2x8xf32>
    %6 = tpu.iota {dimensions = array<i32: 0>} : vector<2x1xi32>
    %cst = arith.constant 0.000000e+00 : f32
    %7 = vector.broadcast %cst : f32 to vector<2x16xf32>
    %cst_5 = arith.constant 0.000000e+00 : f32
    %8 = vector.broadcast %cst_5 : f32 to vector<2x1xf32>
    %c0_6 = arith.constant 0 : index
    %c0_7 = arith.constant 0 : index
    %c0_8 = arith.constant 0 : index
    %9 = vector.load %arg2[%c0_6, %c0_7, %c0_8] : memref<2x8x32xf32, #tpu.memory_space<vmem>>, vector<1x8x32xf32>
    %10 = vector.shape_cast %9 : vector<1x8x32xf32> to vector<8x32xf32>
    %c0_9 = arith.constant 0 : index
    %c0_10 = arith.constant 0 : index
    %c0_11 = arith.constant 0 : index
    %11 = vector.load %arg3[%c0_9, %c0_10, %c0_11] : memref<2x8x16xf32, #tpu.memory_space<vmem>>, vector<1x8x16xf32>
    %12 = vector.shape_cast %11 : vector<1x8x16xf32> to vector<8x16xf32>
    %cst_12 = arith.constant dense<0.000000e+00> : vector<1x8xf32>
    %13 = tpu.matmul %3, %10, %cst_12 {dimension_numbers = #tpu.dot_dimension_numbers<[1], [1], [0], [0], [0, 0, 1, 0], [], []>} : vector<1x32xf32>, vector<8x32xf32>, vector<1x8xf32> -> vector<1x8xf32>
    %14 = vector.broadcast %4 : f32 to vector<1x8xf32>
    %15 = arith.addf %13, %14 : vector<1x8xf32>
    %16 = arith.negf %15 : vector<1x8xf32>
    %17 = math.exp %16 : vector<1x8xf32>
    %cst_13 = arith.constant 1.000000e+00 : f32
    %18 = vector.broadcast %cst_13 : f32 to vector<1x8xf32>
    %19 = arith.addf %18, %17 : vector<1x8xf32>
    %20 = arith.divf %18, %19 : vector<1x8xf32>
    %21 = vector.extract_strided_slice %5 {offsets = [0, 0], sizes = [1, 8], strides = [1, 1]} : vector<2x8xf32> to vector<1x8xf32>
    %22 = arith.mulf %20, %21 : vector<1x8xf32>
    %cst_14 = arith.constant dense<0.000000e+00> : vector<1x16xf32>
    %23 = tpu.matmul %22, %12, %cst_14 {dimension_numbers = #tpu.dot_dimension_numbers<[1], [0], [0], [1], [0, 0, 1, 1], [], []>} : vector<1x8xf32>, vector<8x16xf32>, vector<1x16xf32> -> vector<1x16xf32>
    %cst_15 = arith.constant dense<0.000000e+00> : vector<1xf32>
    %24 = vector.multi_reduction <add>, %22, %cst_15 [1] : vector<1x8xf32> to vector<1xf32>
    %25 = vector.shape_cast %24 : vector<1xf32> to vector<1x1xf32>
    %c0_i32_16 = arith.constant 0 : i32
    %26 = vector.broadcast %c0_i32_16 : i32 to vector<2x1xi32>
    %27 = arith.cmpi eq, %6, %26 : vector<2x1xi32>
    %28 = arith.extui %27 : vector<2x1xi1> to vector<2x1xi32>
    %29 = arith.sitofp %28 : vector<2x1xi32> to vector<2x1xf32>
    %30 = vector.broadcast %29 : vector<2x1xf32> to vector<2x16xf32>
    %31 = vector.broadcast %23 : vector<1x16xf32> to vector<2x16xf32>
    %32 = arith.mulf %30, %31 : vector<2x16xf32>
    %33 = arith.addf %7, %32 : vector<2x16xf32>
    %34 = vector.broadcast %25 : vector<1x1xf32> to vector<2x1xf32>
    %35 = arith.mulf %29, %34 : vector<2x1xf32>
    %36 = arith.addf %8, %35 : vector<2x1xf32>
    %c1 = arith.constant 1 : index
    %c0_17 = arith.constant 0 : index
    %c0_18 = arith.constant 0 : index
    %37 = vector.load %arg2[%c1, %c0_17, %c0_18] : memref<2x8x32xf32, #tpu.memory_space<vmem>>, vector<1x8x32xf32>
    %38 = vector.shape_cast %37 : vector<1x8x32xf32> to vector<8x32xf32>
    %c1_19 = arith.constant 1 : index
    %c0_20 = arith.constant 0 : index
    %c0_21 = arith.constant 0 : index
    %39 = vector.load %arg3[%c1_19, %c0_20, %c0_21] : memref<2x8x16xf32, #tpu.memory_space<vmem>>, vector<1x8x16xf32>
    %40 = vector.shape_cast %39 : vector<1x8x16xf32> to vector<8x16xf32>
    %cst_22 = arith.constant dense<0.000000e+00> : vector<1x8xf32>
    %41 = tpu.matmul %3, %38, %cst_22 {dimension_numbers = #tpu.dot_dimension_numbers<[1], [1], [0], [0], [0, 0, 1, 0], [], []>} : vector<1x32xf32>, vector<8x32xf32>, vector<1x8xf32> -> vector<1x8xf32>
    %42 = vector.broadcast %4 : f32 to vector<1x8xf32>
    %43 = arith.addf %41, %42 : vector<1x8xf32>
    %44 = arith.negf %43 : vector<1x8xf32>
    %45 = math.exp %44 : vector<1x8xf32>
    %cst_23 = arith.constant 1.000000e+00 : f32
    %46 = vector.broadcast %cst_23 : f32 to vector<1x8xf32>
    %47 = arith.addf %46, %45 : vector<1x8xf32>
    %48 = arith.divf %46, %47 : vector<1x8xf32>
    %49 = vector.extract_strided_slice %5 {offsets = [1, 0], sizes = [1, 8], strides = [1, 1]} : vector<2x8xf32> to vector<1x8xf32>
    %50 = arith.mulf %48, %49 : vector<1x8xf32>
    %cst_24 = arith.constant dense<0.000000e+00> : vector<1x16xf32>
    %51 = tpu.matmul %50, %40, %cst_24 {dimension_numbers = #tpu.dot_dimension_numbers<[1], [0], [0], [1], [0, 0, 1, 1], [], []>} : vector<1x8xf32>, vector<8x16xf32>, vector<1x16xf32> -> vector<1x16xf32>
    %cst_25 = arith.constant dense<0.000000e+00> : vector<1xf32>
    %52 = vector.multi_reduction <add>, %50, %cst_25 [1] : vector<1x8xf32> to vector<1xf32>
    %53 = vector.shape_cast %52 : vector<1xf32> to vector<1x1xf32>
    %c1_i32 = arith.constant 1 : i32
    %54 = vector.broadcast %c1_i32 : i32 to vector<2x1xi32>
    %55 = arith.cmpi eq, %6, %54 : vector<2x1xi32>
    %56 = arith.extui %55 : vector<2x1xi1> to vector<2x1xi32>
    %57 = arith.sitofp %56 : vector<2x1xi32> to vector<2x1xf32>
    %58 = vector.broadcast %57 : vector<2x1xf32> to vector<2x16xf32>
    %59 = vector.broadcast %51 : vector<1x16xf32> to vector<2x16xf32>
    %60 = arith.mulf %58, %59 : vector<2x16xf32>
    %61 = arith.addf %33, %60 : vector<2x16xf32>
    %62 = vector.broadcast %53 : vector<1x1xf32> to vector<2x1xf32>
    %63 = arith.mulf %57, %62 : vector<2x1xf32>
    %64 = arith.addf %36, %63 : vector<2x1xf32>
    %c0_26 = arith.constant 0 : index
    %c0_27 = arith.constant 0 : index
    %65 = vector.load %arg8[%c0_26, %c0_27] : memref<2x16xf32, #tpu.memory_space<vmem>>, vector<2x16xf32>
    %66 = arith.addf %65, %61 : vector<2x16xf32>
    %c0_28 = arith.constant 0 : index
    %c0_29 = arith.constant 0 : index
    %67 = vector.load %arg8[%c0_28, %c0_29] : memref<2x16xf32, #tpu.memory_space<vmem>>, vector<2x16xf32>
    tpu.vector_store %arg8[%c0_28, %c0_29], %66 {strides = array<i32>} : memref<2x16xf32, #tpu.memory_space<vmem>>, vector<2x16xf32>,
    %c0_30 = arith.constant 0 : index
    %c0_31 = arith.constant 0 : index
    %68 = vector.load %arg9[%c0_30, %c0_31] : memref<2x1xf32, #tpu.memory_space<vmem>>, vector<2x1xf32>
    %69 = arith.addf %68, %64 : vector<2x1xf32>
    %c0_32 = arith.constant 0 : index
    %c0_33 = arith.constant 0 : index
    %70 = vector.load %arg9[%c0_32, %c0_33] : memref<2x1xf32, #tpu.memory_space<vmem>>, vector<2x1xf32>
    tpu.vector_store %arg9[%c0_32, %c0_33], %69 {strides = array<i32>} : memref<2x1xf32, #tpu.memory_space<vmem>>, vector<2x1xf32>,
    %c0_i32_34 = arith.constant 0 : i32
    %71 = arith.cmpi eq, %arg1, %c0_i32_34 : i32
    %72 = arith.extui %71 : i1 to i32
    %c0_i32_35 = arith.constant 0 : i32
    %73 = arith.cmpi ne, %72, %c0_i32_35 : i32
    scf.if %73 {
      %c0_36 = arith.constant 0 : index
      %c0_37 = arith.constant 0 : index
      %74 = vector.load %arg9[%c0_36, %c0_37] : memref<2x1xf32, #tpu.memory_space<vmem>>, vector<2x1xf32>
      %cst_38 = arith.constant 9.99999997E-7 : f32
      %75 = vector.broadcast %cst_38 : f32 to vector<2x1xf32>
      %76 = arith.maximumf %74, %75 : vector<2x1xf32>
      %c0_39 = arith.constant 0 : index
      %c0_40 = arith.constant 0 : index
      %77 = vector.load %arg8[%c0_39, %c0_40] : memref<2x16xf32, #tpu.memory_space<vmem>>, vector<2x16xf32>
      %78 = vector.broadcast %76 : vector<2x1xf32> to vector<2x16xf32>
      %79 = arith.divf %77, %78 : vector<2x16xf32>
      %c0_41 = arith.constant 0 : index
      %c0_42 = arith.constant 0 : index
      %80 = vector.load %arg7[%c0_41, %c0_42] : memref<2x16xf32, #tpu.memory_space<vmem>>, vector<2x16xf32>
      tpu.vector_store %arg7[%c0_41, %c0_42], %79 {strides = array<i32>} : memref<2x16xf32, #tpu.memory_space<vmem>>, vector<2x16xf32>,
    } else {
    }
    return
  }
  func.func @transform_0(%arg0: i32, %arg1: i32) -> (i32, i32, i32) {
    %c0_i32 = arith.constant 0 : i32
    %c0_i32_0 = arith.constant 0 : i32
    return %arg0, %arg1, %c0_i32 : i32, i32, i32
  }
  func.func @transform_1(%arg0: i32, %arg1: i32) -> (i32, i32, i32) {
    %c0_i32 = arith.constant 0 : i32
    %c0_i32_0 = arith.constant 0 : i32
    return %arg0, %arg1, %c0_i32 : i32, i32, i32
  }
  func.func @transform_2(%arg0: i32, %arg1: i32) -> (i32, i32) {
    %c0_i32 = arith.constant 0 : i32
    return %arg0, %arg1 : i32, i32
  }
  func.func @transform_3(%arg0: i32, %arg1: i32) -> (i32, i32) {
    %c0_i32 = arith.constant 0 : i32
    %c0_i32_0 = arith.constant 0 : i32
    %c0_i32_1 = arith.constant 0 : i32
    return %c0_i32, %c0_i32_0 : i32, i32
  }
  func.func @transform_4(%arg0: i32, %arg1: i32) -> i32 {
    %c0_i32 = arith.constant 0 : i32
    %c0_i32_0 = arith.constant 0 : i32
    return %c0_i32 : i32
  }
  func.func @transform_5(%arg0: i32, %arg1: i32) -> (i32, i32) {
    %c0_i32 = arith.constant 0 : i32
    %c0_i32_0 = arith.constant 0 : i32
    return %arg0, %c0_i32 : i32, i32
  }
}

</mosaic_0001>

<llo_original>
// kernel: tpu_custom_call.1
$region0: #{tpu_custom_call.1}
  #allocation0 [shape = 'u32[]', space=smem, size = 0x4, offset = 0x4, fixed_abs, tag = 'smem constant byte address 0x4 - core index']
  #allocation1 [shape = 'u32[144,128]{1,0:T(1,128)}', space=vmem, size = 0x12000, scoped, tag = 'internal scratch']
  #allocation2 [shape = 'f32[2,16]{1,0:T(2,128)}', space=vmem, size = 0x400, scoped, tag = 'scratch operand']
  #allocation3 [shape = 'f32[2,1]{1,0:T(2,128)}', space=vmem, size = 0x400, scoped, tag = 'scratch operand']
  #allocation4 [shape = 'f32[1]{0:T(128)S(6)}', space=smem, size = 0x200, scoped, tag = 'scoped memory for tpu_custom_call.1']
  %s0 = inlined_call_operand.hbm [shape: f32[2,8,32], index: 0, kind: input, shape index: {}]
  %s1 = inlined_call_operand.hbm [shape: f32[2,8,16], index: 1, kind: input, shape index: {}]
  %s2 = inlined_call_operand.vmem [shape: f32[2,8], index: 2, kind: input, shape index: {}]
  %s3 = inlined_call_operand.vmem [shape: f32[1,32], index: 3, kind: input, shape index: {}]
  %s4 = inlined_call_operand.<no memory space> [shape: f32[1], index: 4, kind: input, shape index: {}]
  %s5 = inlined_call_operand.hbm [shape: f32[2,16], index: 5, kind: output, shape index: {}]
  %s6 = sld [smem:[#allocation0]]
  $region46: #{tpu_custom_call.1} parent=0
    _
  %s8 = ssub.s32 1, %s6
  %s9 = scalar_select 0, %s8, %s6
  %10 = sst [smem:[#allocation4]] %s4
  $region1: #{tpu_custom_call.1} parent=0
    #allocation5 [shape = 'u8[8192]{0}', space=vmem, size = 0x2000, scoped, tag = 'input window, operand 0, single buffered']
    #allocation6 [shape = 's32[1]{0}', space=sflag, size = 0x4, scoped, tag = 'scoped memory for tpu_custom_call.1']
    #allocation7 [shape = 's32[1]{0}', space=sflag, size = 0x4, scoped, tag = 'scoped memory for tpu_custom_call.1']
    #allocation8 [shape = 'u8[8192]{0}', space=vmem, size = 0x2000, scoped, tag = 'input window, operand 1, single buffered']
    #allocation9 [shape = 's32[1]{0}', space=sflag, size = 0x4, scoped, tag = 'scoped memory for tpu_custom_call.1']
    #allocation10 [shape = 'u8[1024]{0}', space=vmem, size = 0x400, scoped, tag = 'output window, operand 0, single buffered']
    %11 = vsyncpa [#allocation6], 0
    %12 = vsyncpa [#allocation9], 0
    %13 = vsyncpa [#allocation7], 0
    // Predicated region
    $region2: #{tpu_custom_call.1} parent=1 // pred_check
      _
    $region3: #{tpu_custom_call.1} parent=1 // pred_check_branch
      %15 = sbr.rel (0) target = $region5
    $region4: #{tpu_custom_call.1} parent=1 // pred_region
      %s17 = ssub.s32 256, 256
      %18 = vsyncadd [#allocation6], %s17
      %s19 = sshll.u32 [#allocation5], 4
      %s20 = int_to_ptr.vmem [resolvable:$true] %s19
      %25 = dma.hbm_to_vmem [thread:$0]  %s0, 256, %s20, [#allocation6], 128, 128, 8
    $region5: #{tpu_custom_call.1} parent=1 // pred_fallthru
      _
    // Predicated region
    $region6: #{tpu_custom_call.1} parent=1 // pred_check
      _
    $region7: #{tpu_custom_call.1} parent=1 // pred_check_branch
      %27 = sbr.rel (0) target = $region9
    $region8: #{tpu_custom_call.1} parent=1 // pred_region
      %s29 = ssub.s32 256, 256
      %30 = vsyncadd [#allocation9], %s29
      %s31 = sshll.u32 [#allocation8], 4
      %s32 = int_to_ptr.vmem [resolvable:$true] %s31
      %37 = dma.hbm_to_vmem [thread:$0]  %s1, 256, %s32, [#allocation9], 128, 128, 8
    $region9: #{tpu_custom_call.1} parent=1 // pred_fallthru
      _
    // Predicated region
    $region10: #{tpu_custom_call.1} parent=1 // pred_check
      _
    $region11: #{tpu_custom_call.1} parent=1 // pred_check_branch
      %39 = sbr.rel (0) target = $region13
    $region12: #{tpu_custom_call.1} parent=1 // pred_region
      _
    $region13: #{tpu_custom_call.1} parent=1 // pred_fallthru
      _
    // Predicated region
    $region14: #{tpu_custom_call.1} parent=1 // pred_check
      _
    $region15: #{tpu_custom_call.1} parent=1 // pred_check_branch
      %41 = sbr.rel (0) target = $region17
    $region16: #{tpu_custom_call.1} parent=1 // pred_region
      _
    $region17: #{tpu_custom_call.1} parent=1 // pred_fallthru
      _
    // Predicated region
    $region18: #{tpu_custom_call.1} parent=1 // pred_check
      _
    $region19: #{tpu_custom_call.1} parent=1 // pred_check_branch
      %43 = sbr.rel (0) target = $region21
    $region20: #{tpu_custom_call.1} parent=1 // pred_region
      _
    $region21: #{tpu_custom_call.1} parent=1 // pred_fallthru
      _
    // Predicated region
    $region22: #{tpu_custom_call.1} parent=1 // pred_check
      _
    $region23: #{tpu_custom_call.1} parent=1 // pred_check_branch
      %45 = sbr.rel (0) target = $region25
    $region24: #{tpu_custom_call.1} parent=1 // pred_region
      %46 = dma.done [#allocation6], 256
    $region25: #{tpu_custom_call.1} parent=1 // pred_fallthru
      _
    // Predicated region
    $region26: #{tpu_custom_call.1} parent=1 // pred_check
      _
    $region27: #{tpu_custom_call.1} parent=1 // pred_check_branch
      %48 = sbr.rel (0) target = $region29
    $region28: #{tpu_custom_call.1} parent=1 // pred_region
      %49 = dma.done [#allocation9], 256
    $region29: #{tpu_custom_call.1} parent=1 // pred_fallthru
      _
    %p50 = scmp.eq.s32.totalorder 0, 0
    // Predicated region
    $region30: #{tpu_custom_call.1} parent=1 // pred_check
      %p51 = pneg %p50
    $region31: #{tpu_custom_call.1} parent=1 // pred_check_branch
      %53 = sbr.rel (%p51) target = $region33
    $region32: #{tpu_custom_call.1} parent=1 // pred_region
      %vm54 = vcmask 123904
      %55 = vst.msk [vmem:[#allocation2] sm:$0x3] %vm54, 0.0
      %vm56 = vcmask 1024
      %57 = vst.msk [vmem:[#allocation3] sm:$0x3] %vm56, 0.0
    $region33: #{tpu_custom_call.1} parent=1 // pred_fallthru
      _
    %v58 = vld [vmem:[%s3] sm:$0x1]
    %s59 = sld [smem:[#allocation4]]
    %v60 = vld [vmem:[%s2] sm:$0x3]
    %v61 = vlaneseq
    %v62 = vshrl.u32 %v61, 7
    %v63 = vld [vmem:[#allocation5] sm:$0xff]
    %v64 = vld [vmem:[#allocation8] sm:$0xff]
    %v65 = vstv %s59
    %vm66 = vcmask 261120
    %v68 = vsel %vm66, %v58, 0
    %v71 = vsel %vm66, %v63, 0
    %73 = vmatprep.subr.mxu0 0.0
    %74 = vmatpush1.xpose.msra.mxu0 %v71
    %75 = vmatprep.subr.mxu0 0.0
    %76 = vmatpush1.xpose.msra.mxu0 0.0
    %77 = vmatprep.subr.mxu0 0.0
    %78 = vmatpush1.xpose.msra.mxu0 0.0
    %79 = vmatprep.subr.mxu0 0.0
    %80 = vmatpush1.xpose.msra.mxu0 0.0
    %81 = vmatprep.subr.mxu0 0.0
    %82 = vmatpush1.xpose.msra.mxu0 0.0
    %83 = vmatprep.subr.mxu0 0.0
    %84 = vmatpush1.xpose.msra.mxu0 0.0
    %85 = vmatprep.subr.mxu0 0.0
    %86 = vmatpush1.xpose.msra.mxu0 0.0
    %87 = vmatprep.subr.mxu0 0.0
    %88 = vmatpush1.xpose.msra.mxu0 0.0
    %89 = vmatprep.subr.mxu0 0.0
    %90 = vmatpush1.xpose.msra.mxu0 0.0
    %91 = vmatprep.subr.mxu0 0.0
    %92 = vmatpush1.xpose.msra.mxu0 0.0
    %93 = vmatprep.subr.mxu0 0.0
    %94 = vmatpush1.xpose.msra.mxu0 0.0
    %95 = vmatprep.subr.mxu0 0.0
    %96 = vmatpush1.xpose.msra.mxu0 0.0
    %97 = vmatprep.subr.mxu0 0.0
    %98 = vmatpush1.xpose.msra.mxu0 0.0
    %99 = vmatprep.subr.mxu0 0.0
    %100 = vmatpush1.xpose.msra.mxu0 0.0
    %101 = vmatprep.subr.mxu0 0.0
    %102 = vmatpush1.xpose.msra.mxu0 0.0
    %103 = vmatprep.subr.mxu0 0.0
    %104 = vmatpush1.xpose.msra.mxu0 0.0
    %105 = vmatprep.subr.mxu0 0.0
    %106 = vmatpush1.xpose.msra.mxu0 0.0
    %107 = vmatprep.subr.mxu0 0.0
    %108 = vmatpush1.xpose.msra.mxu0 0.0
    %109 = vmatprep.subr.mxu0 0.0
    %110 = vmatpush1.xpose.msra.mxu0 0.0
    %111 = vmatprep.subr.mxu0 0.0
    %112 = vmatpush1.xpose.msra.mxu0 0.0
    %113 = vmatprep.subr.mxu0 0.0
    %114 = vmatpush1.xpose.msra.mxu0 0.0
    %115 = vmatprep.subr.mxu0 0.0
    %116 = vmatpush1.xpose.msra.mxu0 0.0
    %117 = vmatprep.subr.mxu0 0.0
    %118 = vmatpush1.xpose.msra.mxu0 0.0
    %119 = vmatprep.subr.mxu0 0.0
    %120 = vmatpush1.xpose.msra.mxu0 0.0
    %121 = vmatprep.subr.mxu0 0.0
    %122 = vmatpush1.xpose.msra.mxu0 0.0
    %123 = vmatprep.subr.mxu0 0.0
    %124 = vmatpush1.xpose.msra.mxu0 0.0
    %125 = vmatprep.subr.mxu0 0.0
    %126 = vmatpush1.xpose.msra.mxu0 0.0
    %127 = vmatprep.subr.mxu0 0.0
    %128 = vmatpush1.xpose.msra.mxu0 0.0
    %129 = vmatprep.subr.mxu0 0.0
    %130 = vmatpush1.xpose.msra.mxu0 0.0
    %131 = vmatprep.subr.mxu0 0.0
    %132 = vmatpush1.xpose.msra.mxu0 0.0
    %133 = vmatprep.subr.mxu0 0.0
    %134 = vmatpush1.xpose.msra.mxu0 0.0
    %135 = vmatprep.subr.mxu0 0.0
    %136 = vmatpush1.xpose.msra.mxu0 0.0
    %137 = vmatprep.mubr.f32.mxu0 0.0
    %138 = vmatmul.mubr.f32.gmra.mrb[0].mxu0 %v68
    %v139 = vpop.f32.mrb[0].mxu0
    %v140 = vadd.f32 %v65, %v139
    %v141 = vpop.f32.mrb[0].mxu0
    %142 = vdwg.mxu0
    %v143 = vxor.u32 %v140, 2147483648
    %v144 = vmul.f32 %v143, 1.442695
    %v145 = vpow.pop %v144
    %v146 = vadd.f32 %v145, 1.0
    %v147 = vrcp.pop %v146
    %v148 = vmul.f32 1.0, %v147
    %v149 = vmul.f32 %v148, %v60
    %vm150 = vcmask 64512
    %v152 = vsel %vm150, %v149, 0
    %154 = vmatprep.subr.mxu0 0.0
    %155 = vmatpush1.msra.mxu0 %v64
    %156 = vmatprep.subr.mxu0 0.0
    %157 = vmatpush1.msra.mxu0 0.0
    %158 = vmatprep.subr.mxu0 0.0
    %159 = vmatpush1.msra.mxu0 0.0
    %160 = vmatprep.subr.mxu0 0.0
    %161 = vmatpush1.msra.mxu0 0.0
    %162 = vmatprep.subr.mxu0 0.0
    %163 = vmatpush1.msra.mxu0 0.0
    %164 = vmatprep.subr.mxu0 0.0
    %165 = vmatpush1.msra.mxu0 0.0
    %166 = vmatprep.subr.mxu0 0.0
    %167 = vmatpush1.msra.mxu0 0.0
    %168 = vmatprep.subr.mxu0 0.0
    %169 = vmatpush1.msra.mxu0 0.0
    %170 = vmatprep.subr.mxu0 0.0
    %171 = vmatpush1.msra.mxu0 0.0
    %172 = vmatprep.subr.mxu0 0.0
    %173 = vmatpush1.msra.mxu0 0.0
    %174 = vmatprep.subr.mxu0 0.0
    %175 = vmatpush1.msra.mxu0 0.0
    %176 = vmatprep.subr.mxu0 0.0
    %177 = vmatpush1.msra.mxu0 0.0
    %178 = vmatprep.subr.mxu0 0.0
    %179 = vmatpush1.msra.mxu0 0.0
    %180 = vmatprep.subr.mxu0 0.0
    %181 = vmatpush1.msra.mxu0 0.0
    %182 = vmatprep.subr.mxu0 0.0
    %183 = vmatpush1.msra.mxu0 0.0
    %184 = vmatprep.subr.mxu0 0.0
    %185 = vmatpush1.msra.mxu0 0.0
    %186 = vmatprep.subr.mxu0 0.0
    %187 = vmatpush1.msra.mxu0 0.0
    %188 = vmatprep.subr.mxu0 0.0
    %189 = vmatpush1.msra.mxu0 0.0
    %190 = vmatprep.subr.mxu0 0.0
    %191 = vmatpush1.msra.mxu0 0.0
    %192 = vmatprep.subr.mxu0 0.0
    %193 = vmatpush1.msra.mxu0 0.0
    %194 = vmatprep.subr.mxu0 0.0
    %195 = vmatpush1.msra.mxu0 0.0
    %196 = vmatprep.subr.mxu0 0.0
    %197 = vmatpush1.msra.mxu0 0.0
    %198 = vmatprep.subr.mxu0 0.0
    %199 = vmatpush1.msra.mxu0 0.0
    %200 = vmatprep.subr.mxu0 0.0
    %201 = vmatpush1.msra.mxu0 0.0
    %202 = vmatprep.subr.mxu0 0.0
    %203 = vmatpush1.msra.mxu0 0.0
    %204 = vmatprep.subr.mxu0 0.0
    %205 = vmatpush1.msra.mxu0 0.0
    %206 = vmatprep.subr.mxu0 0.0
    %207 = vmatpush1.msra.mxu0 0.0
    %208 = vmatprep.subr.mxu0 0.0
    %209 = vmatpush1.msra.mxu0 0.0
    %210 = vmatprep.subr.mxu0 0.0
    %211 = vmatpush1.msra.mxu0 0.0
    %212 = vmatprep.subr.mxu0 0.0
    %213 = vmatpush1.msra.mxu0 0.0
    %214 = vmatprep.subr.mxu0 0.0
    %215 = vmatpush1.msra.mxu0 0.0
    %216 = vmatprep.subr.mxu0 0.0
    %217 = vmatpush1.msra.mxu0 0.0
    %218 = vmatprep.mubr.f32.mxu0 0.0
    %219 = vmatmul.mubr.f32.gmra.mrb[0].mxu0 %v152
    %v220 = vpop.f32.mrb[0].mxu0
    %v221 = vadd.f32 0.0, %v220
    %v222 = vpop.f32.mrb[0].mxu0
    %223 = vdwg.mxu0
    %vm224 = vcmask 57344
    %v225 = vsel %vm224, %v149, 0.0
    %226 = vadd.xlane.f32.xlu0 %v225
    %v227 = vpop.xlane.xlu0 %226
    %vm228 = vcmp.eq.s32.totalorder %v62, 0
    %v229 = vsel %vm228, 1, 0
    %v230 = vcvt.s32.f32 %v229
    %v231 = vlaneseq
    %v232 = vshrl.u32 %v231, 7
    %v233 = vsub.s32 0, %v232
    %v234 = vrot.slane %v221, %v233
    %v235 = vmul.f32 %v230, %v234
    %v236 = vadd.f32 %v235, 0.0
    %v237 = vlaneseq
    %v238 = vshrl.u32 %v237, 7
    %v239 = vsub.s32 0, %v238
    %v240 = vrot.slane %v227, %v239
    %v241 = vmul.f32 %v230, %v240
    %v242 = vadd.f32 %v241, 0.0
    %s243 = scalar_lea.vmem [#allocation5], 8
    %v244 = vld [vmem:[%s243] sm:$0xff]
    %s245 = scalar_lea.vmem [#allocation8], 8
    %v246 = vld [vmem:[%s245] sm:$0xff]
    %v248 = vsel %vm66, %v244, 0
    %250 = vmatprep.subr.mxu0 0.0
    %251 = vmatpush1.xpose.msra.mxu0 %v248
    %252 = vmatprep.subr.mxu0 0.0
    %253 = vmatpush1.xpose.msra.mxu0 0.0
    %254 = vmatprep.subr.mxu0 0.0
    %255 = vmatpush1.xpose.msra.mxu0 0.0
    %256 = vmatprep.subr.mxu0 0.0
    %257 = vmatpush1.xpose.msra.mxu0 0.0
    %258 = vmatprep.subr.mxu0 0.0
    %259 = vmatpush1.xpose.msra.mxu0 0.0
    %260 = vmatprep.subr.mxu0 0.0
    %261 = vmatpush1.xpose.msra.mxu0 0.0
    %262 = vmatprep.subr.mxu0 0.0
    %263 = vmatpush1.xpose.msra.mxu0 0.0
    %264 = vmatprep.subr.mxu0 0.0
    %265 = vmatpush1.xpose.msra.mxu0 0.0
    %266 = vmatprep.subr.mxu0 0.0
    %267 = vmatpush1.xpose.msra.mxu0 0.0
    %268 = vmatprep.subr.mxu0 0.0
    %269 = vmatpush1.xpose.msra.mxu0 0.0
    %270 = vmatprep.subr.mxu0 0.0
    %271 = vmatpush1.xpose.msra.mxu0 0.0
    %272 = vmatprep.subr.mxu0 0.0
    %273 = vmatpush1.xpose.msra.mxu0 0.0
    %274 = vmatprep.subr.mxu0 0.0
    %275 = vmatpush1.xpose.msra.mxu0 0.0
    %276 = vmatprep.subr.mxu0 0.0
    %277 = vmatpush1.xpose.msra.mxu0 0.0
    %278 = vmatprep.subr.mxu0 0.0
    %279 = vmatpush1.xpose.msra.mxu0 0.0
    %280 = vmatprep.subr.mxu0 0.0
    %281 = vmatpush1.xpose.msra.mxu0 0.0
    %282 = vmatprep.subr.mxu0 0.0
    %283 = vmatpush1.xpose.msra.mxu0 0.0
    %284 = vmatprep.subr.mxu0 0.0
    %285 = vmatpush1.xpose.msra.mxu0 0.0
    %286 = vmatprep.subr.mxu0 0.0
    %287 = vmatpush1.xpose.msra.mxu0 0.0
    %288 = vmatprep.subr.mxu0 0.0
    %289 = vmatpush1.xpose.msra.mxu0 0.0
    %290 = vmatprep.subr.mxu0 0.0
    %291 = vmatpush1.xpose.msra.mxu0 0.0
    %292 = vmatprep.subr.mxu0 0.0
    %293 = vmatpush1.xpose.msra.mxu0 0.0
    %294 = vmatprep.subr.mxu0 0.0
    %295 = vmatpush1.xpose.msra.mxu0 0.0
    %296 = vmatprep.subr.mxu0 0.0
    %297 = vmatpush1.xpose.msra.mxu0 0.0
    %298 = vmatprep.subr.mxu0 0.0
    %299 = vmatpush1.xpose.msra.mxu0 0.0
    %300 = vmatprep.subr.mxu0 0.0
    %301 = vmatpush1.xpose.msra.mxu0 0.0
    %302 = vmatprep.subr.mxu0 0.0
    %303 = vmatpush1.xpose.msra.mxu0 0.0
    %304 = vmatprep.subr.mxu0 0.0
    %305 = vmatpush1.xpose.msra.mxu0 0.0
    %306 = vmatprep.subr.mxu0 0.0
    %307 = vmatpush1.xpose.msra.mxu0 0.0
    %308 = vmatprep.subr.mxu0 0.0
    %309 = vmatpush1.xpose.msra.mxu0 0.0
    %310 = vmatprep.subr.mxu0 0.0
    %311 = vmatpush1.xpose.msra.mxu0 0.0
    %312 = vmatprep.subr.mxu0 0.0
    %313 = vmatpush1.xpose.msra.mxu0 0.0
    %314 = vmatprep.mubr.f32.mxu0 0.0
    %315 = vmatmul.mubr.f32.gmra.mrb[0].mxu0 %v68
    %v316 = vpop.f32.mrb[0].mxu0
    %v317 = vadd.f32 %v65, %v316
    %v318 = vpop.f32.mrb[0].mxu0
    %319 = vdwg.mxu0
    %v320 = vxor.u32 %v317, 2147483648
    %v321 = vmul.f32 %v320, 1.442695
    %v322 = vpow.pop %v321
    %v323 = vadd.f32 %v322, 1.0
    %v324 = vrcp.pop %v323
    %v325 = vmul.f32 1.0, %v324
    %v327 = vrot.slane %v60, 1
    %v329 = vmul.f32 %v325, %v327
    %v331 = vsel %vm150, %v329, 0
    %333 = vmatprep.subr.mxu0 0.0
    %334 = vmatpush1.msra.mxu0 %v246
    %335 = vmatprep.subr.mxu0 0.0
    %336 = vmatpush1.msra.mxu0 0.0
    %337 = vmatprep.subr.mxu0 0.0
    %338 = vmatpush1.msra.mxu0 0.0
    %339 = vmatprep.subr.mxu0 0.0
    %340 = vmatpush1.msra.mxu0 0.0
    %341 = vmatprep.subr.mxu0 0.0
    %342 = vmatpush1.msra.mxu0 0.0
    %343 = vmatprep.subr.mxu0 0.0
    %344 = vmatpush1.msra.mxu0 0.0
    %345 = vmatprep.subr.mxu0 0.0
    %346 = vmatpush1.msra.mxu0 0.0
    %347 = vmatprep.subr.mxu0 0.0
    %348 = vmatpush1.msra.mxu0 0.0
    %349 = vmatprep.subr.mxu0 0.0
    %350 = vmatpush1.msra.mxu0 0.0
    %351 = vmatprep.subr.mxu0 0.0
    %352 = vmatpush1.msra.mxu0 0.0
    %353 = vmatprep.subr.mxu0 0.0
    %354 = vmatpush1.msra.mxu0 0.0
    %355 = vmatprep.subr.mxu0 0.0
    %356 = vmatpush1.msra.mxu0 0.0
    %357 = vmatprep.subr.mxu0 0.0
    %358 = vmatpush1.msra.mxu0 0.0
    %359 = vmatprep.subr.mxu0 0.0
    %360 = vmatpush1.msra.mxu0 0.0
    %361 = vmatprep.subr.mxu0 0.0
    %362 = vmatpush1.msra.mxu0 0.0
    %363 = vmatprep.subr.mxu0 0.0
    %364 = vmatpush1.msra.mxu0 0.0
    %365 = vmatprep.subr.mxu0 0.0
    %366 = vmatpush1.msra.mxu0 0.0
    %367 = vmatprep.subr.mxu0 0.0
    %368 = vmatpush1.msra.mxu0 0.0
    %369 = vmatprep.subr.mxu0 0.0
    %370 = vmatpush1.msra.mxu0 0.0
    %371 = vmatprep.subr.mxu0 0.0
    %372 = vmatpush1.msra.mxu0 0.0
    %373 = vmatprep.subr.mxu0 0.0
    %374 = vmatpush1.msra.mxu0 0.0
    %375 = vmatprep.subr.mxu0 0.0
    %376 = vmatpush1.msra.mxu0 0.0
    %377 = vmatprep.subr.mxu0 0.0
    %378 = vmatpush1.msra.mxu0 0.0
    %379 = vmatprep.subr.mxu0 0.0
    %380 = vmatpush1.msra.mxu0 0.0
    %381 = vmatprep.subr.mxu0 0.0
    %382 = vmatpush1.msra.mxu0 0.0
    %383 = vmatprep.subr.mxu0 0.0
    %384 = vmatpush1.msra.mxu0 0.0
    %385 = vmatprep.subr.mxu0 0.0
    %386 = vmatpush1.msra.mxu0 0.0
    %387 = vmatprep.subr.mxu0 0.0
    %388 = vmatpush1.msra.mxu0 0.0
    %389 = vmatprep.subr.mxu0 0.0
    %390 = vmatpush1.msra.mxu0 0.0
    %391 = vmatprep.subr.mxu0 0.0
    %392 = vmatpush1.msra.mxu0 0.0
    %393 = vmatprep.subr.mxu0 0.0
    %394 = vmatpush1.msra.mxu0 0.0
    %395 = vmatprep.subr.mxu0 0.0
    %396 = vmatpush1.msra.mxu0 0.0
    %397 = vmatprep.mubr.f32.mxu0 0.0
    %398 = vmatmul.mubr.f32.gmra.mrb[0].mxu0 %v331
    %v399 = vpop.f32.mrb[0].mxu0
    %v400 = vadd.f32 0.0, %v399
    %v401 = vpop.f32.mrb[0].mxu0
    %402 = vdwg.mxu0
    %v403 = vsel %vm224, %v329, 0.0
    %404 = vadd.xlane.f32.xlu0 %v403
    %v405 = vpop.xlane.xlu0 %404
    %vm406 = vcmp.eq.s32.totalorder %v62, 1
    %v407 = vsel %vm406, 1, 0
    %v408 = vcvt.s32.f32 %v407
    %v409 = vlaneseq
    %v410 = vshrl.u32 %v409, 7
    %v411 = vsub.s32 0, %v410
    %v412 = vrot.slane %v400, %v411
    %v413 = vmul.f32 %v408, %v412
    %v414 = vadd.f32 %v236, %v413
    %v415 = vlaneseq
    %v416 = vshrl.u32 %v415, 7
    %v417 = vsub.s32 0, %v416
    %v418 = vrot.slane %v405, %v417
    %v419 = vmul.f32 %v408, %v418
    %v420 = vadd.f32 %v242, %v419
    %v421 = vld [vmem:[#allocation2] sm:$0x3]
    %v422 = vadd.f32 %v421, %v414
    %vm423 = vcmask 123904
    %424 = vst.msk [vmem:[#allocation2] sm:$0x3] %vm423, %v422
    %v425 = vld [vmem:[#allocation3] sm:$0x3]
    %v426 = vadd.f32 %v425, %v420
    %vm427 = vcmask 1024
    %428 = vst.msk [vmem:[#allocation3] sm:$0x3] %vm427, %v426
    // Predicated region
    $region34: #{tpu_custom_call.1} parent=1 // pred_check
      %p429 = pneg %p50
    $region35: #{tpu_custom_call.1} parent=1 // pred_check_branch
      %431 = sbr.rel (%p429) target = $region37
    $region36: #{tpu_custom_call.1} parent=1 // pred_region
      %v432 = vld [vmem:[#allocation3] sm:$0x3]
      %v433 = vmax.f32 %v432, 1e-06
      %v434 = vld [vmem:[#allocation2] sm:$0x3]
      %436 = vset.pattern.permute.xlu0 0
      %437 = vperm.xlu0 %436, %v433
      %v438 = vpop.permute.xlu0 %437
      %v440 = vrcp.pop %v438
      %v441 = vmul.f32 %v434, %v440
      %442 = vst.msk [vmem:[#allocation10] sm:$0x3] %vm423, %v441
    $region37: #{tpu_custom_call.1} parent=1 // pred_fallthru
      _
    // Predicated region
    $region38: #{tpu_custom_call.1} parent=1 // pred_check
      _
    $region39: #{tpu_custom_call.1} parent=1 // pred_check_branch
      %444 = sbr.rel (0) target = $region41
    $region40: #{tpu_custom_call.1} parent=1 // pred_region
      %s446 = ssub.s32 32, 32
      %447 = vsyncadd [#allocation7], %s446
      %s449 = sshll.u32 [#allocation10], 4
      %s450 = int_to_ptr.vmem [resolvable:$true] %s449
      %452 = dma.vmem_to_hbm [thread:$0]  %s450, 32, %s5, [#allocation7]
    $region41: #{tpu_custom_call.1} parent=1 // pred_fallthru
      _
    // Predicated region
    $region42: #{tpu_custom_call.1} parent=1 // pred_check
      _
    $region43: #{tpu_custom_call.1} parent=1 // pred_check_branch
      %454 = sbr.rel (0) target = $region45
    $region44: #{tpu_custom_call.1} parent=1 // pred_region
      %455 = dma.done [#allocation7], 32
    $region45: #{tpu_custom_call.1} parent=1 // pred_fallthru
      _
    %456 = vsyncpa [#allocation6], 1
    %457 = vsyncpa [#allocation9], 1
    %458 = vsyncpa [#allocation7], 1

</llo_original>
